<compile_context>
chip_gen: v7x
topology: tpu7x:2x2x1
jax: 0.10.0
libtpu: 0.0.40
codegen_flags: <defaults>
</compile_context>

<pallas_src>
import functools
import math

import jax
import jax.numpy as jnp
from jax.experimental import pallas as pl
from jax.experimental.pallas import tpu as pltpu


# ----------------------------------------------------------------------------
# Deterministic pseudo-random ordering keys for the "random negatives".
# Exact-integer f32 arithmetic -> bit-identical between the Pallas kernel and the
# pure-JAX reference. Lane index in the low bits guarantees unique keys per row.
# ----------------------------------------------------------------------------
def _pseudo_rand_keys(row, lane, mem_pow2):
    m1, m2 = 8191.0, 4093.0
    h = row * 1103.0 + lane * 5077.0 + 7919.0
    h = h - jnp.floor(h / m1) * m1
    h = h * 1021.0 + lane * 49.0 + 1237.0
    h = h - jnp.floor(h / m2) * m2
    return h * mem_pow2 + lane


# ----------------------------------------------------------------------------
# Kernel 1: projection + L2 normalization     f_normed = (f @ W^T + b) / ||.||
# ----------------------------------------------------------------------------
def _project_normalize_kernel(f_ref, w_ref, b_ref, out_ref):
    proj = jnp.dot(f_ref[...], w_ref[...], preferred_element_type=jnp.float32)
    proj = proj + b_ref[...]
    ss = jnp.sum(proj * proj, axis=-1, keepdims=True)
    out_ref[...] = (proj * jax.lax.rsqrt(ss + jnp.float32(1e-12))).astype(out_ref.dtype)


def _project_normalize(f_bf16, w_t_bf16, b_row, *, tb):
    n_pad, cin = f_bf16.shape
    cout = w_t_bf16.shape[1]
    return pl.pallas_call(
        _project_normalize_kernel,
        out_shape=jax.ShapeDtypeStruct((n_pad, cout), jnp.float32),
        grid_spec=pltpu.PrefetchScalarGridSpec(
            num_scalar_prefetch=0,
            grid=(n_pad // tb,),
            in_specs=[
                pl.BlockSpec((tb, cin), lambda i: (i, 0)),      # batch-row tile (bf16)
                pl.BlockSpec((cin, cout), lambda i: (0, 0)),    # weights, resident (bf16)
                pl.BlockSpec((1, cout), lambda i: (0, 0)),      # bias, resident (f32)
            ],
            out_specs=pl.BlockSpec((tb, cout), lambda i: (i, 0)),
        ),
        compiler_params=pltpu.CompilerParams(
            dimension_semantics=("parallel",),
            vmem_limit_bytes=32 * 1024 * 1024,
        ),
    )(f_bf16, w_t_bf16, b_row)


# ----------------------------------------------------------------------------
# Kernel 2: fused similarities + pair mining + InfoNCE cross-entropy partials
# ----------------------------------------------------------------------------
def _infonce_loss_kernel(f_ref, bank_ref, label_ref, banklab_ref, flag_ref, out_ref, *,
                         positive_num, negative_num, inv_temp, mem_pow2, val_scale,
                         tile_rows):
    # similarities against the (already updated) bank, contracting the channel axis
    # of the untransposed (mem, cout) bank -> single MXU matmul, no host transpose.
    sims = jax.lax.dot_general(
        f_ref[...], bank_ref[...],
        dimension_numbers=(((1,), (1,)), ((), ())),
        preferred_element_type=jnp.float32)                       # (tb, mem) f32

    on = flag_ref[...] > 0.0                                      # (1, mem)
    same = label_ref[...] == banklab_ref[...]                     # (tb, mem)
    pos_mask = jnp.logical_and(same, on)
    neg_mask = jnp.logical_and(jnp.logical_not(same), on)

    pos_count = jnp.sum(pos_mask.astype(jnp.float32), axis=-1, keepdims=True)
    neg_count = jnp.sum(neg_mask.astype(jnp.float32), axis=-1, keepdims=True)

    lane = jax.lax.broadcasted_iota(jnp.int32, sims.shape, 1).astype(jnp.float32)
    row0 = (pl.program_id(0) * tile_rows).astype(jnp.float32)
    row = row0 + jax.lax.broadcasted_iota(jnp.int32, sims.shape, 0).astype(jnp.float32)

    mp = jnp.float32(mem_pow2)
    inv_t = jnp.float32(inv_temp)
    neg_sent = jnp.float32(-3.0e7)
    pos_sent = jnp.float32(3.0e7)

    # pack (quantized value, lane) into a single exact-integer f32 key: one XLU
    # reduction per selection both selects the extreme element and tie-breaks.
    qv = jnp.floor(sims * jnp.float32(val_scale) + 0.5)
    neg_key = jnp.where(neg_mask, qv * mp + (mp - 1.0 - lane), neg_sent)
    pos_key = jnp.where(pos_mask, qv * mp + lane, pos_sent)
    rnd_key = jnp.where(neg_mask, _pseudo_rand_keys(row, lane, mp), jnp.float32(-1.0))

    exp_all = jnp.exp(sims * inv_t)                               # EUP slot, reused twice

    # --- N hardest negatives: build a selection mask with one max per pick ---
    sel_hard = jnp.zeros(sims.shape, dtype=jnp.bool_)
    for _ in range(negative_num):
        kmax = jnp.max(neg_key, axis=-1, keepdims=True)
        hit = neg_key == kmax
        sel_hard = jnp.logical_or(sel_hard, hit)
        neg_key = jnp.where(hit, neg_sent, neg_key)
    s_hard = jnp.sum(jnp.where(sel_hard, exp_all, 0.0), axis=-1, keepdims=True)

    # --- N random negatives: same scheme on on-chip pseudo-random keys ---
    # TODO(synk): deterministic hash ordering, not PyTorch's random.sample (same spirit).
    sel_rand = jnp.zeros(sims.shape, dtype=jnp.bool_)
    for _ in range(negative_num):
        kmax = jnp.max(rnd_key, axis=-1, keepdims=True)
        hit = rnd_key == kmax
        sel_rand = jnp.logical_or(sel_rand, hit)
        rnd_key = jnp.where(hit, jnp.float32(-1.0), rnd_key)
    s_rand = jnp.sum(jnp.where(sel_rand, exp_all, 0.0), axis=-1, keepdims=True)

    # --- P hardest positives (smallest sims): value recovered from the packed key ---
    # TODO(synk): direct exp/log (not log-sum-exp); fine for T=0.8 and |sims|<=1.
    ce_sum = jnp.zeros_like(pos_count)
    for _ in range(positive_num):
        kmin = jnp.min(pos_key, axis=-1, keepdims=True)
        v = jnp.floor(kmin / mp) * jnp.float32(1.0 / val_scale)
        ph = v * inv_t
        e = jnp.exp(ph)
        ce_sum = ce_sum + (jnp.log(e + s_hard) - ph) + (jnp.log(e + s_rand) - ph)
        pos_key = jnp.where(pos_key == kmin, pos_sent, pos_key)

    valid = jnp.logical_and(pos_count >= jnp.float32(positive_num),
                            neg_count >= jnp.float32(negative_num))
    num_part = jnp.sum(jnp.where(valid, ce_sum, 0.0))
    cnt_part = jnp.sum(jnp.where(valid, jnp.float32(2 * positive_num), 0.0))

    # lane-dense per-tile partial output: row 0 carries the numerator, row 1 the count
    r = jax.lax.broadcasted_iota(jnp.int32, (1, 8, 128), 1)
    out_ref[...] = jnp.where(r == 0, num_part, jnp.where(r == 1, cnt_part, 0.0))


def _infonce_loss(f_bf16, bank_bf16, label_col, banklab_row, flag_row, *,
                  positive_num, negative_num, temperature, tb):
    n_pad, cout = f_bf16.shape
    mem = bank_bf16.shape[0]
    n_tiles = n_pad // tb
    mem_pow2 = 1 << (mem - 1).bit_length()
    # value quantization scale chosen so |qv| * mem_pow2 stays exactly representable in f32
    val_scale = float(2 ** max(2, 22 - (mem_pow2.bit_length() - 1)))
    kernel = functools.partial(
        _infonce_loss_kernel,
        positive_num=positive_num, negative_num=negative_num,
        inv_temp=float(1.0 / temperature), mem_pow2=float(mem_pow2),
        val_scale=val_scale, tile_rows=tb)
    parts = pl.pallas_call(
        kernel,
        out_shape=jax.ShapeDtypeStruct((n_tiles, 8, 128), jnp.float32),
        grid_spec=pltpu.PrefetchScalarGridSpec(
            num_scalar_prefetch=0,
            grid=(n_tiles,),
            in_specs=[
                pl.BlockSpec((tb, cout), lambda i: (i, 0)),     # f_normed rows (bf16)
                pl.BlockSpec((mem, cout), lambda i: (0, 0)),    # bank, resident (bf16)
                pl.BlockSpec((tb, 1), lambda i: (i, 0)),        # batch labels
                pl.BlockSpec((1, mem), lambda i: (0, 0)),       # bank labels (resident)
                pl.BlockSpec((1, mem), lambda i: (0, 0)),       # bank flag (resident)
            ],
            out_specs=pl.BlockSpec((1, 8, 128), lambda i: (i, 0, 0)),
        ),
        compiler_params=pltpu.CompilerParams(
            dimension_semantics=("parallel",),                  # megacore-friendly partials
            vmem_limit_bytes=32 * 1024 * 1024,
        ),
    )(f_bf16, bank_bf16, label_col, banklab_row, flag_row)
    num = jnp.sum(parts[:, 0, 0])
    cnt = jnp.sum(parts[:, 1, 0])
    return jnp.where(cnt > 0.0, num / cnt, jnp.float32(0.0))


# ----------------------------------------------------------------------------
# Full forward (= InfoNCEGraph.forward): returns (loss, new_bank, new_bank_flag)
# ----------------------------------------------------------------------------
def infonce_graph_forward(f, label, input_index, weight, bias, bank, bank_flag,
                          label_all, *, positive_num=4, negative_num=16, T=0.8, tb=128):
    n, cin = f.shape
    cout = weight.shape[0]
    mem = bank.shape[0]

    # pad the batch to a multiple of the row tile; padded rows (label = -1) can never
    # be valid, so they contribute nothing to the loss.
    n_pad = ((n + tb - 1) // tb) * tb
    pad = n_pad - n
    f_p = jnp.pad(f.astype(jnp.float32), ((0, pad), (0, 0)))
    label_p = jnp.pad(label.astype(jnp.int32), (0, pad), constant_values=-1)

    # kernel 1: projection + L2 normalization (bf16 MXU operands, f32 output)
    w_t = weight.astype(jnp.bfloat16).T                    # (Cin, Cout)
    b_row = bias.astype(jnp.float32).reshape(1, cout)
    f_normed_p = _project_normalize(f_p.astype(jnp.bfloat16), w_t, b_row, tb=tb)
    f_normed = f_normed_p[:n]

    # memory-bank state update (Bank[input_index] = f_normed ; flag[input_index] = 1)
    # TODO(synk): donate bank/bank_flag under jax.jit in production to avoid a full-bank copy.
    bank_new = bank.astype(jnp.float32).at[input_index].set(f_normed)
    flag_new = bank_flag.astype(jnp.float32).at[input_index].set(1.0)

    # kernel 2: fused similarities + pair mining + InfoNCE loss (bank in natural layout)
    loss = _infonce_loss(
        f_normed_p.astype(jnp.bfloat16),
        bank_new.astype(jnp.bfloat16),
        label_p.reshape(n_pad, 1),
        label_all.astype(jnp.int32).reshape(1, mem),
        flag_new.reshape(1, mem),
        positive_num=positive_num, negative_num=negative_num, temperature=T, tb=tb)
    return loss, bank_new, flag_new


# ----------------------------------------------------------------------------
# Pure-JAX reference (same semantics, sort/top_k based) for verification
# ----------------------------------------------------------------------------
def _infonce_ref(f, label, input_index, weight, bias, bank, bank_flag, label_all,
                 positive_num, negative_num, T):
    hp = jax.lax.Precision.HIGHEST
    f32 = jnp.float32
    n = f.shape[0]
    mem = bank.shape[0]
    mem_pow2 = 1 << (mem - 1).bit_length()
    proj = jnp.dot(f.astype(f32), weight.astype(f32).T, precision=hp) + bias.astype(f32)
    f_normed = proj / jnp.sqrt(jnp.sum(proj * proj, axis=-1, keepdims=True))
    bank = bank.astype(f32).at[input_index].set(f_normed)
    flag = bank_flag.astype(f32).at[input_index].set(1.0)
    sims = jnp.dot(f_normed, bank.T, precision=hp)
    on = flag[None, :] > 0.0
    same = label[:, None] == label_all[None, :]
    pos_mask = same & on
    neg_mask = (~same) & on
    pos_count = jnp.sum(pos_mask, axis=-1)
    neg_count = jnp.sum(neg_mask, axis=-1)
    valid = (pos_count >= positive_num) & (neg_count >= negative_num)
    sent = 30.0
    pos_hard = jnp.sort(jnp.where(pos_mask, sims, sent), axis=-1)[:, :positive_num]
    neg_hard = jax.lax.top_k(jnp.where(neg_mask, sims, -sent), negative_num)[0]
    row = jnp.arange(n, dtype=f32)[:, None]
    lane = jnp.arange(mem, dtype=f32)[None, :]
    rkey = _pseudo_rand_keys(row, lane, float(mem_pow2))
    _, rand_idx = jax.lax.top_k(jnp.where(neg_mask, rkey, -1.0), negative_num)
    neg_rand = jnp.take_along_axis(sims, rand_idx, axis=-1)
    ph = pos_hard / T
    s_hard = jnp.sum(jnp.exp(neg_hard / T), axis=-1, keepdims=True)
    s_rand = jnp.sum(jnp.exp(neg_rand / T), axis=-1, keepdims=True)
    ce = (jnp.log(jnp.exp(ph) + s_hard) - ph) + (jnp.log(jnp.exp(ph) + s_rand) - ph)
    row_sum = jnp.sum(ce, axis=-1)
    num = jnp.sum(jnp.where(valid, row_sum, 0.0))
    cnt = jnp.sum(jnp.where(valid, 2.0 * positive_num, 0.0))
    loss = jnp.where(cnt > 0.0, num / cnt, 0.0)
    return loss, bank, flag


if __name__ == "__main__":
    key = jax.random.PRNGKey(0)
    ks = jax.random.split(key, 7)

    n = 16
    in_channels = 128
    out_channels = 256
    mem_size = 512
    positive_num = 4
    negative_num = 16
    T = 0.8
    class_num = 16

    f = jax.random.normal(ks[0], (n, in_channels), dtype=jnp.float32)
    weight = jax.random.normal(ks[1], (out_channels, in_channels),
                               dtype=jnp.float32) * math.sqrt(2.0 / class_num)
    bias = jax.random.normal(ks[2], (out_channels,), dtype=jnp.float32) * 0.1

    # realistic "warm" memory-bank state (buffers of the module after some training)
    bank0 = jax.random.normal(ks[3], (mem_size, out_channels), dtype=jnp.float32)
    bank0 = bank0 / jnp.linalg.norm(bank0, axis=-1, keepdims=True)
    label_all = jax.random.randint(ks[4], (mem_size,), 0, class_num, dtype=jnp.int32)
    flag0 = (jax.random.uniform(ks[5], (mem_size,)) > 0.1).astype(jnp.float32)

    input_index = jax.random.permutation(ks[6], mem_size)[:n]
    label = label_all[input_index]
    label = label.at[0].set(class_num + 7)   # one sample with no positives -> skipped

    loss, bank_new, flag_new = infonce_graph_forward(
        f, label, input_index, weight, bias, bank0, flag0, label_all,
        positive_num=positive_num, negative_num=negative_num, T=T, tb=128)
    loss = jax.block_until_ready(loss)

    ref_loss, ref_bank, _ = _infonce_ref(
        f, label, input_index, weight, bias, bank0, flag0, label_all,
        positive_num, negative_num, T)
    ref_loss = jax.block_until_ready(ref_loss)

    assert bool(jnp.isfinite(loss)), loss
    # loss tolerance accounts for bf16 MXU operands vs the f32 HIGHEST reference
    assert jnp.allclose(loss, ref_loss, rtol=2e-2, atol=2e-2), (loss, ref_loss)
    assert jnp.allclose(bank_new, ref_bank, rtol=1e-2, atol=1e-2)
    print("KERNEL_OK")
</pallas_src>

<mosaic_0001>
module attributes {stable_mosaic.version = 11 : i64} {
  func.func @_project_normalize_kernel(%arg0: i32, %arg1: memref<128x128xbf16, #tpu.memory_space<vmem>>, %arg2: memref<128x256xbf16, #tpu.memory_space<vmem>>, %arg3: memref<1x256xf32, #tpu.memory_space<vmem>>, %arg4: memref<128x256xf32, #tpu.memory_space<vmem>>) attributes {dimension_semantics = [#tpu.dimension_semantics<parallel>], iteration_bounds = array<i64: 1>, scalar_prefetch = 0 : i64, scratch_operands = 0 : i64, tpu.core_type = #tpu.core_type<tc>, window_params = [{transform_indices = @transform_0, window_bounds = array<i64: 128, 128>}, {pipeline_mode = #tpu.pipeline_mode<synchronous>, transform_indices = @transform_1, window_bounds = array<i64: 128, 256>}, {pipeline_mode = #tpu.pipeline_mode<synchronous>, transform_indices = @transform_2, window_bounds = array<i64: 1, 256>}, {transform_indices = @transform_3, window_bounds = array<i64: 128, 256>}]} {
    %c0 = arith.constant 0 : index
    %c0_0 = arith.constant 0 : index
    %0 = vector.load %arg1[%c0, %c0_0] : memref<128x128xbf16, #tpu.memory_space<vmem>>, vector<128x128xbf16>
    %c0_1 = arith.constant 0 : index
    %c0_2 = arith.constant 0 : index
    %1 = vector.load %arg2[%c0_1, %c0_2] : memref<128x256xbf16, #tpu.memory_space<vmem>>, vector<128x256xbf16>
    %cst = arith.constant dense<0.000000e+00> : vector<128x256xf32>
    %2 = tpu.matmul %0, %1, %cst {dimension_numbers = #tpu.dot_dimension_numbers<[1], [0], [0], [1], [0, 0, 1, 1], [], []>} : vector<128x128xbf16>, vector<128x256xbf16>, vector<128x256xf32> -> vector<128x256xf32>
    %c0_3 = arith.constant 0 : index
    %c0_4 = arith.constant 0 : index
    %3 = vector.load %arg3[%c0_3, %c0_4] : memref<1x256xf32, #tpu.memory_space<vmem>>, vector<1x256xf32>
    %4 = vector.broadcast %3 : vector<1x256xf32> to vector<128x256xf32>
    %5 = arith.addf %2, %4 : vector<128x256xf32>
    %6 = arith.mulf %5, %5 : vector<128x256xf32>
    %cst_5 = arith.constant dense<0.000000e+00> : vector<128xf32>
    %7 = vector.multi_reduction <add>, %6, %cst_5 [1] : vector<128x256xf32> to vector<128xf32>
    %8 = vector.shape_cast %7 : vector<128xf32> to vector<128x1xf32>
    %cst_6 = arith.constant 9.99999996E-13 : f32
    %9 = vector.broadcast %cst_6 : f32 to vector<128x1xf32>
    %10 = arith.addf %8, %9 : vector<128x1xf32>
    %11 = math.rsqrt %10 : vector<128x1xf32>
    %12 = vector.broadcast %11 : vector<128x1xf32> to vector<128x256xf32>
    %13 = arith.mulf %5, %12 : vector<128x256xf32>
    %c0_7 = arith.constant 0 : index
    %c0_8 = arith.constant 0 : index
    %14 = vector.load %arg4[%c0_7, %c0_8] : memref<128x256xf32, #tpu.memory_space<vmem>>, vector<128x256xf32>
    tpu.vector_store %arg4[%c0_7, %c0_8], %13 {strides = array<i32>} : memref<128x256xf32, #tpu.memory_space<vmem>>, vector<128x256xf32>,
    return
  }
  func.func @transform_0(%arg0: i32) -> (i32, i32) {
    %c0_i32 = arith.constant 0 : i32
    %c0_i32_0 = arith.constant 0 : i32
    return %arg0, %c0_i32 : i32, i32
  }
  func.func @transform_1(%arg0: i32) -> (i32, i32) {
    %c0_i32 = arith.constant 0 : i32
    %c0_i32_0 = arith.constant 0 : i32
    %c0_i32_1 = arith.constant 0 : i32
    return %c0_i32, %c0_i32_0 : i32, i32
  }
  func.func @transform_2(%arg0: i32) -> (i32, i32) {
    %c0_i32 = arith.constant 0 : i32
    %c0_i32_0 = arith.constant 0 : i32
    %c0_i32_1 = arith.constant 0 : i32
    return %c0_i32, %c0_i32_0 : i32, i32
  }
  func.func @transform_3(%arg0: i32) -> (i32, i32) {
    %c0_i32 = arith.constant 0 : i32
    %c0_i32_0 = arith.constant 0 : i32
    return %arg0, %c0_i32 : i32, i32
  }
}

</mosaic_0001>

<llo_original>
// kernel: tpu_custom_call.1
$region0: #{tpu_custom_call.1}
  #allocation0 [shape = 'u32[]', space=smem, size = 0x4, offset = 0x4, fixed_abs, tag = 'smem constant byte address 0x4 - core index']
  #allocation1 [shape = 'u32[144,128]{1,0:T(1,128)}', space=vmem, size = 0x12000, scoped, tag = 'internal scratch']
  %s0 = inlined_call_operand.hbm [shape: bf16[128,128], index: 0, kind: input, shape index: {}]
  %s1 = inlined_call_operand.hbm [shape: bf16[128,256], index: 1, kind: input, shape index: {}]
  %s2 = inlined_call_operand.vmem [shape: f32[1,256], index: 2, kind: input, shape index: {}]
  %s3 = inlined_call_operand.hbm [shape: f32[128,256], index: 3, kind: output, shape index: {}]
  %s4 = sld [smem:[#allocation0]]
  $region30: #{tpu_custom_call.1} parent=0
    _
  %s6 = ssub.s32 1, %s4
  %s7 = scalar_select 0, %s6, %s4
  $region1: #{tpu_custom_call.1} parent=0
    #allocation2 [shape = 'u8[32768]{0}', space=vmem, size = 0x8000, scoped, tag = 'input window, operand 0, single buffered']
    #allocation3 [shape = 's32[1]{0}', space=sflag, size = 0x4, scoped, tag = 'scoped memory for tpu_custom_call.1']
    #allocation4 [shape = 's32[1]{0}', space=sflag, size = 0x4, scoped, tag = 'scoped memory for tpu_custom_call.1']
    #allocation5 [shape = 'u8[65536]{0}', space=vmem, size = 0x10000, scoped, tag = 'input window, operand 1, single buffered']
    #allocation6 [shape = 's32[1]{0}', space=sflag, size = 0x4, scoped, tag = 'scoped memory for tpu_custom_call.1']
    #allocation7 [shape = 'u8[131072]{0}', space=vmem, size = 0x20000, scoped, tag = 'output window, operand 0, single buffered']
    %8 = vsyncpa [#allocation3], 0
    %9 = vsyncpa [#allocation6], 0
    %10 = vsyncpa [#allocation4], 0
    // Predicated region
    $region2: #{tpu_custom_call.1} parent=1 // pred_check
      _
    $region3: #{tpu_custom_call.1} parent=1 // pred_check_branch
      %12 = sbr.rel (0) target = $region5
    $region4: #{tpu_custom_call.1} parent=1 // pred_region
      %s14 = ssub.s32 1024, 1024
      %15 = vsyncadd [#allocation3], %s14
      %s16 = sshll.u32 [#allocation2], 4
      %s17 = int_to_ptr.vmem [resolvable:$true] %s16
      %22 = dma.hbm_to_vmem [thread:$0]  %s0, 1024, %s17, [#allocation3], 64, 64, 4
    $region5: #{tpu_custom_call.1} parent=1 // pred_fallthru
      _
    // Predicated region
    $region6: #{tpu_custom_call.1} parent=1 // pred_check
      _
    $region7: #{tpu_custom_call.1} parent=1 // pred_check_branch
      %24 = sbr.rel (0) target = $region9
    $region8: #{tpu_custom_call.1} parent=1 // pred_region
      %s26 = ssub.s32 2048, 2048
      %27 = vsyncadd [#allocation6], %s26
      %s28 = sshll.u32 [#allocation5], 4
      %s29 = int_to_ptr.vmem [resolvable:$true] %s28
      %34 = dma.hbm_to_vmem [thread:$0]  %s1, 2048, %s29, [#allocation6], 128, 128, 8
    $region9: #{tpu_custom_call.1} parent=1 // pred_fallthru
      _
    // Predicated region
    $region10: #{tpu_custom_call.1} parent=1 // pred_check
      _
    $region11: #{tpu_custom_call.1} parent=1 // pred_check_branch
      %36 = sbr.rel (0) target = $region13
    $region12: #{tpu_custom_call.1} parent=1 // pred_region
      _
    $region13: #{tpu_custom_call.1} parent=1 // pred_fallthru
      _
    // Predicated region
    $region14: #{tpu_custom_call.1} parent=1 // pred_check
      _
    $region15: #{tpu_custom_call.1} parent=1 // pred_check_branch
      %38 = sbr.rel (0) target = $region17
    $region16: #{tpu_custom_call.1} parent=1 // pred_region
      %39 = dma.done [#allocation3], 1024
    $region17: #{tpu_custom_call.1} parent=1 // pred_fallthru
      _
    // Predicated region
    $region18: #{tpu_custom_call.1} parent=1 // pred_check
      _
    $region19: #{tpu_custom_call.1} parent=1 // pred_check_branch
      %41 = sbr.rel (0) target = $region21
    $region20: #{tpu_custom_call.1} parent=1 // pred_region
      %42 = dma.done [#allocation6], 2048
    $region21: #{tpu_custom_call.1} parent=1 // pred_fallthru
      _
    %v44 = vld [vmem:[#allocation2] sm:$0xf]
    %v45 = vld [vmem:[#allocation2 + $0x4] sm:$0xf]
    %v46 = vld [vmem:[#allocation2 + $0x8] sm:$0xf]
    %v47 = vld [vmem:[#allocation2 + $0xc] sm:$0xf]
    %v48 = vld [vmem:[#allocation2 + $0x10] sm:$0xf]
    %v49 = vld [vmem:[#allocation2 + $0x14] sm:$0xf]
    %v50 = vld [vmem:[#allocation2 + $0x18] sm:$0xf]
    %v51 = vld [vmem:[#allocation2 + $0x1c] sm:$0xf]
    %v52 = vld [vmem:[#allocation2 + $0x20] sm:$0xf]
    %v53 = vld [vmem:[#allocation2 + $0x24] sm:$0xf]
    %v54 = vld [vmem:[#allocation2 + $0x28] sm:$0xf]
    %v55 = vld [vmem:[#allocation2 + $0x2c] sm:$0xf]
    %v56 = vld [vmem:[#allocation2 + $0x30] sm:$0xf]
    %v57 = vld [vmem:[#allocation2 + $0x34] sm:$0xf]
    %v58 = vld [vmem:[#allocation2 + $0x38] sm:$0xf]
    %v59 = vld [vmem:[#allocation2 + $0x3c] sm:$0xf]
    %v60 = vld [vmem:[#allocation5] sm:$0xff]
    %v61 = vld [vmem:[#allocation5 + $0x8] sm:$0xff]
    %v62 = vld [vmem:[#allocation5 + $0x10] sm:$0xff]
    %v63 = vld [vmem:[#allocation5 + $0x18] sm:$0xff]
    %v64 = vld [vmem:[#allocation5 + $0x20] sm:$0xff]
    %v65 = vld [vmem:[#allocation5 + $0x28] sm:$0xff]
    %v66 = vld [vmem:[#allocation5 + $0x30] sm:$0xff]
    %v67 = vld [vmem:[#allocation5 + $0x38] sm:$0xff]
    %v68 = vld [vmem:[#allocation5 + $0x40] sm:$0xff]
    %v69 = vld [vmem:[#allocation5 + $0x48] sm:$0xff]
    %v70 = vld [vmem:[#allocation5 + $0x50] sm:$0xff]
    %v71 = vld [vmem:[#allocation5 + $0x58] sm:$0xff]
    %v72 = vld [vmem:[#allocation5 + $0x60] sm:$0xff]
    %v73 = vld [vmem:[#allocation5 + $0x68] sm:$0xff]
    %v74 = vld [vmem:[#allocation5 + $0x70] sm:$0xff]
    %v75 = vld [vmem:[#allocation5 + $0x78] sm:$0xff]
    %v76 = vld [vmem:[%s2] sm:$0x3]
    %v78 = vlaneseq
    %v79 = vshrl.u32 %v78, 7
    %v80 = vsub.s32 0, %v79
    %v81 = vrot.slane %v76, %v80
    %v82 = vlaneseq
    %v83 = vshrl.u32 %v82, 7
    %v84 = vsub.s32 1, %v83
    %v85 = vrot.slane %v76, %v84
    %v104 = vunpack.c.l.b16 %v44
    %v105 = vunpack.c.l.b16 %v45
    %v106 = vunpack.c.l.b16 %v46
    %v107 = vunpack.c.l.b16 %v47
    %v108 = vunpack.c.l.b16 %v48
    %v109 = vunpack.c.l.b16 %v49
    %v110 = vunpack.c.l.b16 %v50
    %v111 = vunpack.c.l.b16 %v51
    %v112 = vunpack.c.l.b16 %v52
    %v113 = vunpack.c.l.b16 %v53
    %v114 = vunpack.c.l.b16 %v54
    %v115 = vunpack.c.l.b16 %v55
    %v116 = vunpack.c.l.b16 %v56
    %v117 = vunpack.c.l.b16 %v57
    %v118 = vunpack.c.l.b16 %v58
    %v119 = vunpack.c.l.b16 %v59
    %v120 = vpack.c.b16 %v105, %v104
    %v121 = vpack.c.b16 %v107, %v106
    %v122 = vpack.c.b16 %v109, %v108
    %v123 = vpack.c.b16 %v111, %v110
    %v124 = vpack.c.b16 %v113, %v112
    %v125 = vpack.c.b16 %v115, %v114
    %v126 = vpack.c.b16 %v117, %v116
    %v127 = vpack.c.b16 %v119, %v118
    %v152 = vunpack.c.l.b16 %v60
    %v153 = vunpack.c.h.b16 %v60
    %v154 = vunpack.c.l.b16 %v61
    %v155 = vunpack.c.h.b16 %v61
    %v156 = vunpack.c.l.b16 %v62
    %v157 = vunpack.c.h.b16 %v62
    %v158 = vunpack.c.l.b16 %v63
    %v159 = vunpack.c.h.b16 %v63
    %v160 = vunpack.c.l.b16 %v64
    %v161 = vunpack.c.h.b16 %v64
    %v162 = vunpack.c.l.b16 %v65
    %v163 = vunpack.c.h.b16 %v65
    %v164 = vunpack.c.l.b16 %v66
    %v165 = vunpack.c.h.b16 %v66
    %v166 = vunpack.c.l.b16 %v67
    %v167 = vunpack.c.h.b16 %v67
    %v168 = vunpack.c.l.b16 %v68
    %v169 = vunpack.c.h.b16 %v68
    %v170 = vunpack.c.l.b16 %v69
    %v171 = vunpack.c.h.b16 %v69
    %v172 = vunpack.c.l.b16 %v70
    %v173 = vunpack.c.h.b16 %v70
    %v174 = vunpack.c.l.b16 %v71
    %v175 = vunpack.c.h.b16 %v71
    %v176 = vunpack.c.l.b16 %v72
    %v177 = vunpack.c.h.b16 %v72
    %v178 = vunpack.c.l.b16 %v73
    %v179 = vunpack.c.h.b16 %v73
    %v180 = vunpack.c.l.b16 %v74
    %v181 = vunpack.c.h.b16 %v74
    %v182 = vunpack.c.l.b16 %v75
    %v183 = vunpack.c.h.b16 %v75
    %v184 = vpack.c.b16 %v154, %v152
    %v185 = vpack.c.b16 %v155, %v153
    %v186 = vpack.c.b16 %v158, %v156
    %v187 = vpack.c.b16 %v159, %v157
    %v188 = vpack.c.b16 %v162, %v160
    %v189 = vpack.c.b16 %v163, %v161
    %v190 = vpack.c.b16 %v166, %v164
    %v191 = vpack.c.b16 %v167, %v165
    %v192 = vpack.c.b16 %v170, %v168
    %v193 = vpack.c.b16 %v171, %v169
    %v194 = vpack.c.b16 %v174, %v172
    %v195 = vpack.c.b16 %v175, %v173
    %v196 = vpack.c.b16 %v178, %v176
    %v197 = vpack.c.b16 %v179, %v177
    %v198 = vpack.c.b16 %v182, %v180
    %v199 = vpack.c.b16 %v183, %v181
    %216 = vmatprep.subr.bf16.mxu0 %v185
    %217 = vmatpush1.bf16.msra.mxu0 %v184
    %218 = vmatprep.subr.bf16.mxu0 %v187
    %219 = vmatpush1.bf16.msra.mxu0 %v186
    %220 = vmatprep.subr.bf16.mxu0 %v189
    %221 = vmatpush1.bf16.msra.mxu0 %v188
    %222 = vmatprep.subr.bf16.mxu0 %v191
    %223 = vmatpush1.bf16.msra.mxu0 %v190
    %224 = vmatprep.subr.bf16.mxu0 %v193
    %225 = vmatpush1.bf16.msra.mxu0 %v192
    %226 = vmatprep.subr.bf16.mxu0 %v195
    %227 = vmatpush1.bf16.msra.mxu0 %v194
    %228 = vmatprep.subr.bf16.mxu0 %v197
    %229 = vmatpush1.bf16.msra.mxu0 %v196
    %230 = vmatprep.subr.bf16.mxu0 %v199
    %231 = vmatpush1.bf16.msra.mxu0 %v198
    %232 = vmatprep.subr.bf16.mxu0 0
    %233 = vmatpush1.bf16.msra.mxu0 0
    %234 = vmatprep.subr.bf16.mxu0 0
    %235 = vmatpush1.bf16.msra.mxu0 0
    %236 = vmatprep.subr.bf16.mxu0 0
    %237 = vmatpush1.bf16.msra.mxu0 0
    %238 = vmatprep.subr.bf16.mxu0 0
    %239 = vmatpush1.bf16.msra.mxu0 0
    %240 = vmatprep.subr.bf16.mxu0 0
    %241 = vmatpush1.bf16.msra.mxu0 0
    %242 = vmatprep.subr.bf16.mxu0 0
    %243 = vmatpush1.bf16.msra.mxu0 0
    %244 = vmatprep.subr.bf16.mxu0 0
    %245 = vmatpush1.bf16.msra.mxu0 0
    %246 = vmatprep.subr.bf16.mxu0 0
    %247 = vmatpush1.bf16.msra.mxu0 0
    %248 = vmatprep.mubr.bf16.mxu0 0
    %249 = vmatmul.mubr.bf16.gmra.mrb[0].mxu0 %v120
    %v250 = vpop.f32.mrb[0].mxu0
    %v251 = vadd.f32 %v81, %v250
    %v252 = vpop.f32.mrb[0].mxu0
    %v253 = vadd.f32 %v85, %v252
    %v254 = vpop.f32.mrb[0].mxu0
    %v255 = vadd.f32 %v81, %v254
    %v256 = vpop.f32.mrb[0].mxu0
    %v257 = vadd.f32 %v85, %v256
    %258 = vmatprep.mubr.bf16.mxu0 0
    %259 = vmatmul.mubr.bf16.gmra.mrb[0].mxu0 %v121
    %v260 = vpop.f32.mrb[0].mxu0
    %v261 = vadd.f32 %v81, %v260
    %v262 = vpop.f32.mrb[0].mxu0
    %v263 = vadd.f32 %v85, %v262
    %v264 = vpop.f32.mrb[0].mxu0
    %v265 = vadd.f32 %v81, %v264
    %v266 = vpop.f32.mrb[0].mxu0
    %v267 = vadd.f32 %v85, %v266
    %268 = vmatprep.mubr.bf16.mxu0 0
    %269 = vmatmul.mubr.bf16.gmra.mrb[0].mxu0 %v122
    %v270 = vpop.f32.mrb[0].mxu0
    %v271 = vadd.f32 %v81, %v270
    %v272 = vpop.f32.mrb[0].mxu0
    %v273 = vadd.f32 %v85, %v272
    %v274 = vpop.f32.mrb[0].mxu0
    %v275 = vadd.f32 %v81, %v274
    %v276 = vpop.f32.mrb[0].mxu0
    %v277 = vadd.f32 %v85, %v276
    %278 = vmatprep.mubr.bf16.mxu0 0
    %279 = vmatmul.mubr.bf16.gmra.mrb[0].mxu0 %v123
    %v280 = vpop.f32.mrb[0].mxu0
    %v281 = vadd.f32 %v81, %v280
    %v282 = vpop.f32.mrb[0].mxu0
    %v283 = vadd.f32 %v85, %v282
    %v284 = vpop.f32.mrb[0].mxu0
    %v285 = vadd.f32 %v81, %v284
    %v286 = vpop.f32.mrb[0].mxu0
    %v287 = vadd.f32 %v85, %v286
    %288 = vmatprep.mubr.bf16.mxu0 0
    %289 = vmatmul.mubr.bf16.gmra.mrb[0].mxu0 %v124
    %v290 = vpop.f32.mrb[0].mxu0
    %v291 = vadd.f32 %v81, %v290
    %v292 = vpop.f32.mrb[0].mxu0
    %v293 = vadd.f32 %v85, %v292
    %v294 = vpop.f32.mrb[0].mxu0
    %v295 = vadd.f32 %v81, %v294
    %v296 = vpop.f32.mrb[0].mxu0
    %v297 = vadd.f32 %v85, %v296
    %298 = vmatprep.mubr.bf16.mxu0 0
    %299 = vmatmul.mubr.bf16.gmra.mrb[0].mxu0 %v125
    %v300 = vpop.f32.mrb[0].mxu0
    %v301 = vadd.f32 %v81, %v300
    %v302 = vpop.f32.mrb[0].mxu0
    %v303 = vadd.f32 %v85, %v302
    %v304 = vpop.f32.mrb[0].mxu0
    %v305 = vadd.f32 %v81, %v304
    %v306 = vpop.f32.mrb[0].mxu0
    %v307 = vadd.f32 %v85, %v306
    %308 = vmatprep.mubr.bf16.mxu0 0
    %309 = vmatmul.mubr.bf16.gmra.mrb[0].mxu0 %v126
    %v310 = vpop.f32.mrb[0].mxu0
    %v311 = vadd.f32 %v81, %v310
    %v312 = vpop.f32.mrb[0].mxu0
    %v313 = vadd.f32 %v85, %v312
    %v314 = vpop.f32.mrb[0].mxu0
    %v315 = vadd.f32 %v81, %v314
    %v316 = vpop.f32.mrb[0].mxu0
    %v317 = vadd.f32 %v85, %v316
    %318 = vmatprep.mubr.bf16.mxu0 0
    %319 = vmatmul.mubr.bf16.gmra.mrb[0].mxu0 %v127
    %v320 = vpop.f32.mrb[0].mxu0
    %v321 = vadd.f32 %v81, %v320
    %v322 = vpop.f32.mrb[0].mxu0
    %v323 = vadd.f32 %v85, %v322
    %v324 = vpop.f32.mrb[0].mxu0
    %v325 = vadd.f32 %v81, %v324
    %v326 = vpop.f32.mrb[0].mxu0
    %v327 = vadd.f32 %v85, %v326
    %328 = vdwg.mxu0
    %v329 = vmul.f32 %v251, %v251
    %v330 = vmul.f32 %v253, %v253
    %v331 = vmul.f32 %v255, %v255
    %v332 = vmul.f32 %v257, %v257
    %v333 = vmul.f32 %v261, %v261
    %v334 = vmul.f32 %v263, %v263
    %v335 = vmul.f32 %v265, %v265
    %v336 = vmul.f32 %v267, %v267
    %v337 = vmul.f32 %v271, %v271
    %v338 = vmul.f32 %v273, %v273
    %v339 = vmul.f32 %v275, %v275
    %v340 = vmul.f32 %v277, %v277
    %v341 = vmul.f32 %v281, %v281
    %v342 = vmul.f32 %v283, %v283
    %v343 = vmul.f32 %v285, %v285
    %v344 = vmul.f32 %v287, %v287
    %v345 = vmul.f32 %v291, %v291
    %v346 = vmul.f32 %v293, %v293
    %v347 = vmul.f32 %v295, %v295
    %v348 = vmul.f32 %v297, %v297
    %v349 = vmul.f32 %v301, %v301
    %v350 = vmul.f32 %v303, %v303
    %v351 = vmul.f32 %v305, %v305
    %v352 = vmul.f32 %v307, %v307
    %v353 = vmul.f32 %v311, %v311
    %v354 = vmul.f32 %v313, %v313
    %v355 = vmul.f32 %v315, %v315
    %v356 = vmul.f32 %v317, %v317
    %v357 = vmul.f32 %v321, %v321
    %v358 = vmul.f32 %v323, %v323
    %v359 = vmul.f32 %v325, %v325
    %v360 = vmul.f32 %v327, %v327
    %v361 = vadd.f32 %v329, %v330
    %362 = vadd.xlane.f32.xlu0 %v361
    %v363 = vpop.xlane.xlu0 %362
    %v364 = vadd.f32 %v331, %v332
    %365 = vadd.xlane.f32.xlu0 %v364
    %v366 = vpop.xlane.xlu0 %365
    %v367 = vadd.f32 %v333, %v334
    %368 = vadd.xlane.f32.xlu0 %v367
    %v369 = vpop.xlane.xlu0 %368
    %v370 = vadd.f32 %v335, %v336
    %371 = vadd.xlane.f32.xlu0 %v370
    %v372 = vpop.xlane.xlu0 %371
    %v373 = vadd.f32 %v337, %v338
    %374 = vadd.xlane.f32.xlu0 %v373
    %v375 = vpop.xlane.xlu0 %374
    %v376 = vadd.f32 %v339, %v340
    %377 = vadd.xlane.f32.xlu0 %v376
    %v378 = vpop.xlane.xlu0 %377
    %v379 = vadd.f32 %v341, %v342
    %380 = vadd.xlane.f32.xlu0 %v379
    %v381 = vpop.xlane.xlu0 %380
    %v382 = vadd.f32 %v343, %v344
    %383 = vadd.xlane.f32.xlu0 %v382
    %v384 = vpop.xlane.xlu0 %383
    %v385 = vadd.f32 %v345, %v346
    %386 = vadd.xlane.f32.xlu0 %v385
    %v387 = vpop.xlane.xlu0 %386
    %v388 = vadd.f32 %v347, %v348
    %389 = vadd.xlane.f32.xlu0 %v388
    %v390 = vpop.xlane.xlu0 %389
    %v391 = vadd.f32 %v349, %v350
    %392 = vadd.xlane.f32.xlu0 %v391
    %v393 = vpop.xlane.xlu0 %392
    %v394 = vadd.f32 %v351, %v352
    %395 = vadd.xlane.f32.xlu0 %v394
    %v396 = vpop.xlane.xlu0 %395
    %v397 = vadd.f32 %v353, %v354
    %398 = vadd.xlane.f32.xlu0 %v397
    %v399 = vpop.xlane.xlu0 %398
    %v400 = vadd.f32 %v355, %v356
    %401 = vadd.xlane.f32.xlu0 %v400
    %v402 = vpop.xlane.xlu0 %401
    %v403 = vadd.f32 %v357, %v358
    %404 = vadd.xlane.f32.xlu0 %v403
    %v405 = vpop.xlane.xlu0 %404
    %v406 = vadd.f32 %v359, %v360
    %407 = vadd.xlane.f32.xlu0 %v406
    %v408 = vpop.xlane.xlu0 %407
    %v409 = vadd.f32 %v363, 1e-12
    %v410 = vadd.f32 %v366, 1e-12
    %v411 = vadd.f32 %v369, 1e-12
    %v412 = vadd.f32 %v372, 1e-12
    %v413 = vadd.f32 %v375, 1e-12
    %v414 = vadd.f32 %v378, 1e-12
    %v415 = vadd.f32 %v381, 1e-12
    %v416 = vadd.f32 %v384, 1e-12
    %v417 = vadd.f32 %v387, 1e-12
    %v418 = vadd.f32 %v390, 1e-12
    %v419 = vadd.f32 %v393, 1e-12
    %v420 = vadd.f32 %v396, 1e-12
    %v421 = vadd.f32 %v399, 1e-12
    %v422 = vadd.f32 %v402, 1e-12
    %v423 = vadd.f32 %v405, 1e-12
    %v424 = vadd.f32 %v408, 1e-12
    %v425 = vrsqrt.pop %v409
    %v426 = vrsqrt.pop %v410
    %v427 = vrsqrt.pop %v411
    %v428 = vrsqrt.pop %v412
    %v429 = vrsqrt.pop %v413
    %v430 = vrsqrt.pop %v414
    %v431 = vrsqrt.pop %v415
    %v432 = vrsqrt.pop %v416
    %v433 = vrsqrt.pop %v417
    %v434 = vrsqrt.pop %v418
    %v435 = vrsqrt.pop %v419
    %v436 = vrsqrt.pop %v420
    %v437 = vrsqrt.pop %v421
    %v438 = vrsqrt.pop %v422
    %v439 = vrsqrt.pop %v423
    %v440 = vrsqrt.pop %v424
    %v441 = vmul.f32 %v251, %v425
    %v442 = vmul.f32 %v253, %v425
    %v443 = vmul.f32 %v255, %v426
    %v444 = vmul.f32 %v257, %v426
    %v445 = vmul.f32 %v261, %v427
    %v446 = vmul.f32 %v263, %v427
    %v447 = vmul.f32 %v265, %v428
    %v448 = vmul.f32 %v267, %v428
    %v449 = vmul.f32 %v271, %v429
    %v450 = vmul.f32 %v273, %v429
    %v451 = vmul.f32 %v275, %v430
    %v452 = vmul.f32 %v277, %v430
    %v453 = vmul.f32 %v281, %v431
    %v454 = vmul.f32 %v283, %v431
    %v455 = vmul.f32 %v285, %v432
    %v456 = vmul.f32 %v287, %v432
    %v457 = vmul.f32 %v291, %v433
    %v458 = vmul.f32 %v293, %v433
    %v459 = vmul.f32 %v295, %v434
    %v460 = vmul.f32 %v297, %v434
    %v461 = vmul.f32 %v301, %v435
    %v462 = vmul.f32 %v303, %v435
    %v463 = vmul.f32 %v305, %v436
    %v464 = vmul.f32 %v307, %v436
    %v465 = vmul.f32 %v311, %v437
    %v466 = vmul.f32 %v313, %v437
    %v467 = vmul.f32 %v315, %v438
    %v468 = vmul.f32 %v317, %v438
    %v469 = vmul.f32 %v321, %v439
    %v470 = vmul.f32 %v323, %v439
    %v471 = vmul.f32 %v325, %v440
    %v472 = vmul.f32 %v327, %v440
    %473 = vst [vmem:[#allocation7] sm:$0xff] %v441
    %474 = vst [vmem:[#allocation7 + $0x8] sm:$0xff] %v442
    %475 = vst [vmem:[#allocation7 + $0x10] sm:$0xff] %v443
    %476 = vst [vmem:[#allocation7 + $0x18] sm:$0xff] %v444
    %477 = vst [vmem:[#allocation7 + $0x20] sm:$0xff] %v445
    %478 = vst [vmem:[#allocation7 + $0x28] sm:$0xff] %v446
    %479 = vst [vmem:[#allocation7 + $0x30] sm:$0xff] %v447
    %480 = vst [vmem:[#allocation7 + $0x38] sm:$0xff] %v448
    %481 = vst [vmem:[#allocation7 + $0x40] sm:$0xff] %v449
    %482 = vst [vmem:[#allocation7 + $0x48] sm:$0xff] %v450
    %483 = vst [vmem:[#allocation7 + $0x50] sm:$0xff] %v451
    %484 = vst [vmem:[#allocation7 + $0x58] sm:$0xff] %v452
    %485 = vst [vmem:[#allocation7 + $0x60] sm:$0xff] %v453
    %486 = vst [vmem:[#allocation7 + $0x68] sm:$0xff] %v454
    %487 = vst [vmem:[#allocation7 + $0x70] sm:$0xff] %v455
    %488 = vst [vmem:[#allocation7 + $0x78] sm:$0xff] %v456
    %489 = vst [vmem:[#allocation7 + $0x80] sm:$0xff] %v457
    %490 = vst [vmem:[#allocation7 + $0x88] sm:$0xff] %v458
    %491 = vst [vmem:[#allocation7 + $0x90] sm:$0xff] %v459
    %492 = vst [vmem:[#allocation7 + $0x98] sm:$0xff] %v460
    %493 = vst [vmem:[#allocation7 + $0xa0] sm:$0xff] %v461
    %494 = vst [vmem:[#allocation7 + $0xa8] sm:$0xff] %v462
    %495 = vst [vmem:[#allocation7 + $0xb0] sm:$0xff] %v463
    %496 = vst [vmem:[#allocation7 + $0xb8] sm:$0xff] %v464
    %497 = vst [vmem:[#allocation7 + $0xc0] sm:$0xff] %v465
    %498 = vst [vmem:[#allocation7 + $0xc8] sm:$0xff] %v466
    %499 = vst [vmem:[#allocation7 + $0xd0] sm:$0xff] %v467
    %500 = vst [vmem:[#allocation7 + $0xd8] sm:$0xff] %v468
    %501 = vst [vmem:[#allocation7 + $0xe0] sm:$0xff] %v469
    %502 = vst [vmem:[#allocation7 + $0xe8] sm:$0xff] %v470
    %503 = vst [vmem:[#allocation7 + $0xf0] sm:$0xff] %v471
    %504 = vst [vmem:[#allocation7 + $0xf8] sm:$0xff] %v472
    // Predicated region
    $region22: #{tpu_custom_call.1} parent=1 // pred_check
      _
    $region23: #{tpu_custom_call.1} parent=1 // pred_check_branch
      %506 = sbr.rel (0) target = $region25
    $region24: #{tpu_custom_call.1} parent=1 // pred_region
      %s508 = ssub.s32 4096, 4096
      %509 = vsyncadd [#allocation4], %s508
      %s510 = sshll.u32 [#allocation7], 4
      %s511 = int_to_ptr.vmem [resolvable:$true] %s510
      %516 = dma.vmem_to_hbm [thread:$0]  %s511, 4096, %s3, [#allocation4], 256, 256, 16
    $region25: #{tpu_custom_call.1} parent=1 // pred_fallthru
      _
    // Predicated region
    $region26: #{tpu_custom_call.1} parent=1 // pred_check
      _
    $region27: #{tpu_custom_call.1} parent=1 // pred_check_branch
      %518 = sbr.rel (0) target = $region29
    $region28: #{tpu_custom_call.1} parent=1 // pred_region
      %519 = dma.done [#allocation4], 4096
    $region29: #{tpu_custom_call.1} parent=1 // pred_fallthru
      _
    %520 = vsyncpa [#allocation3], 1
    %521 = vsyncpa [#allocation6], 1
    %522 = vsyncpa [#allocation4], 1

</llo_original>
